<compile_context>
chip_gen: v5e
topology: v5e:2x2
jax: 0.10.0
libtpu: 0.0.40
codegen_flags: <defaults>
</compile_context>

<pallas_src>
import jax
import jax.numpy as jnp
from jax import lax
from jax.experimental import pallas as pl
from jax.experimental.pallas import tpu as pltpu

INPUT_SIZE = 13
HIDDEN = 32
NUM_LAYERS = 2          # hardcoded structure: layer0 (I->H), layer1 (H->H)
OUT_LANES = 128         # lane-dense padded fc output width
SUBLANE = 8             # batch padded to a multiple of this


def _rnn_kernel(x_ref,            # (T, B, I) f32, time-major, batch padded
                wih0_ref,         # (I, H)  bf16
                wrec_ref,         # (2H,2H) bf16, blockdiag(Whh0^T, Whh1^T)
                brec_ref,         # (1, 2H) f32,  [0 | b_ih1+b_hh1]
                wih1_ref,         # (H, H)  bf16
                b0_ref,           # (1, H)  f32,  b_ih0+b_hh0
                fcw_ref,          # (H, 128) bf16, zero-padded fc weight
                fcb_ref,          # (1, 128) f32,  zero-padded fc bias
                out_ref,          # (B, 128) f32
                xp_scratch):      # (T, B, H) f32 VMEM scratch
    T, B, I = x_ref.shape
    H = wih1_ref.shape[0]

    # ---- Phase 1: hoisted layer-0 input projection for all timesteps -------------
    # Time-major (T, B, I) with B a full sublane tile -> layout-preserving reshape.
    x_flat = x_ref[...].reshape(T * B, I).astype(jnp.bfloat16)
    xp = (jnp.dot(x_flat, wih0_ref[...], preferred_element_type=jnp.float32)
          + b0_ref[...])                       # includes folded (b_ih0 + b_hh0)
    xp_scratch[...] = xp.reshape(T, B, H)      # per-step reads come from VMEM

    wrec = wrec_ref[...]
    wih1 = wih1_ref[...]
    # Hoisted bias broadcast (JAX does not CSE broadcast_in_dim across unrolled iters).
    brec_b = jnp.broadcast_to(brec_ref[...], (B, 2 * H))

    hcat = jnp.zeros((B, 2 * H), jnp.float32)  # [h0 | h1]

    # ---- Phase 2: recurrence ------------------------------------------------------
    def step(t, hcat):
        # One fused block-diagonal recurrent dot: r = [h0@Whh0^T | h1@Whh1^T] + [0|b1]
        r = (jnp.dot(hcat.astype(jnp.bfloat16), wrec,
                     preferred_element_type=jnp.float32) + brec_b)
        # Layer 0: h0 = tanh(x_t@Wih0^T + (b_ih0+b_hh0) + h0@Whh0^T)
        h0 = jnp.tanh(xp_scratch[t] + r[:, :H])
        # Layer 1: h1 = tanh(h0@Wih1^T + h1@Whh1^T + (b_ih1+b_hh1))
        h1 = jnp.tanh(jnp.dot(h0.astype(jnp.bfloat16), wih1,
                              preferred_element_type=jnp.float32) + r[:, H:])
        return jnp.concatenate([h0, h1], axis=-1)

    if T <= 32:
        # Small static T: full unroll (LLO scheduler visibility).
        for t in range(T):
            hcat = step(t, hcat)
    else:
        # Long sequences: bounded live ranges / code size.
        hcat = lax.fori_loop(0, T, step, hcat)

    # ---- Phase 3: dropout (identity in eval) + fc on the last timestep ------------
    # TODO(synk): training-mode Dropout(p=0.5) mask (and backward) not implemented.
    h1 = hcat[:, H:]
    out_ref[...] = (jnp.dot(h1.astype(jnp.bfloat16), fcw_ref[...],
                            preferred_element_type=jnp.float32) + fcb_ref[...])


def prepare_params(params):
    """One-time weight prep (outside the per-call path): transposes, bias folding,
    block-diagonal packing of the recurrent weights, bf16 casts for MXU operands,
    lane-dense zero-padding of the fc weight/bias to OUT_LANES columns."""
    H = HIDDEN
    wrec = jnp.zeros((2 * H, 2 * H), jnp.float32)
    wrec = wrec.at[:H, :H].set(params["w_hh_l0"].T)
    wrec = wrec.at[H:, H:].set(params["w_hh_l1"].T)
    b1 = params["b_ih_l1"] + params["b_hh_l1"]
    brec = jnp.concatenate([jnp.zeros((H,), jnp.float32), b1]).reshape(1, 2 * H)
    fcw = jnp.zeros((H, OUT_LANES), jnp.float32).at[:, 0].set(params["fc_w"][0])
    fcb = jnp.zeros((1, OUT_LANES), jnp.float32).at[0, 0].set(params["fc_b"][0])
    return {
        "wih0": params["w_ih_l0"].T.astype(jnp.bfloat16),                 # (I, H)
        "wrec": wrec.astype(jnp.bfloat16),                                # (2H, 2H)
        "brec": brec,                                                     # (1, 2H)
        "b0": (params["b_ih_l0"] + params["b_hh_l0"]).reshape(1, H),      # (1, H)
        "wih1": params["w_ih_l1"].T.astype(jnp.bfloat16),                 # (H, H)
        "fcw": fcw.astype(jnp.bfloat16),                                  # (H, 128)
        "fcb": fcb,                                                       # (1, 128)
    }


@jax.jit
def rnn_forward(x, prep):
    """x: (B, T, I) float32 -> (B, 1) float32 (eval-mode forward)."""
    B, T, I = x.shape
    # Pad batch to a full sublane tile: full-sublane dots and an unmasked
    # (8,128)-aligned final store; padded rows are discarded below.
    B_pad = max(SUBLANE, ((B + SUBLANE - 1) // SUBLANE) * SUBLANE)
    x_p = jnp.zeros((B_pad, T, I), x.dtype).at[:B].set(x)
    x_tm = jnp.transpose(x_p, (1, 0, 2))                     # (T, B_pad, I) time-major

    vmem = pl.BlockSpec(memory_space=pltpu.MemorySpace.VMEM)
    # NOTE: at production batch sizes, add a leading grid over B-tiles with
    # dimension_semantics=("parallel",) to use both TensorCores on v7x.
    out_padded = pl.pallas_call(
        _rnn_kernel,
        out_shape=jax.ShapeDtypeStruct((B_pad, OUT_LANES), jnp.float32),
        in_specs=[vmem] * 8,
        out_specs=vmem,
        scratch_shapes=[pltpu.VMEM((T, B_pad, HIDDEN), jnp.float32)],
    )(x_tm, prep["wih0"], prep["wrec"], prep["brec"], prep["wih1"],
      prep["b0"], prep["fcw"], prep["fcb"])
    return out_padded[:B, :1]


def init_params(key):
    """Deterministic init matching nn.RNN(13, 32, 2) + nn.Linear(32, 1) shapes."""
    H, I = HIDDEN, INPUT_SIZE
    ks = jax.random.split(key, 10)
    bound_rnn = 1.0 / jnp.sqrt(H)
    bound_fc = 1.0 / jnp.sqrt(H)
    u = lambda k, shape, b: jax.random.uniform(k, shape, jnp.float32, -b, b)
    return {
        "w_ih_l0": u(ks[0], (H, I), bound_rnn),
        "w_hh_l0": u(ks[1], (H, H), bound_rnn),
        "b_ih_l0": u(ks[2], (H,), bound_rnn),
        "b_hh_l0": u(ks[3], (H,), bound_rnn),
        "w_ih_l1": u(ks[4], (H, H), bound_rnn),
        "w_hh_l1": u(ks[5], (H, H), bound_rnn),
        "b_ih_l1": u(ks[6], (H,), bound_rnn),
        "b_hh_l1": u(ks[7], (H,), bound_rnn),
        "fc_w": u(ks[8], (1, H), bound_fc),
        "fc_b": u(ks[9], (1,), bound_fc),
    }


def reference_forward(x, params):
    """Pure-JAX f32 reference of the PyTorch forward (eval mode)."""
    B, T, I = x.shape
    h0 = jnp.zeros((B, HIDDEN), jnp.float32)
    h1 = jnp.zeros((B, HIDDEN), jnp.float32)
    for t in range(T):
        xt = x[:, t, :]
        h0 = jnp.tanh(xt @ params["w_ih_l0"].T + params["b_ih_l0"]
                      + h0 @ params["w_hh_l0"].T + params["b_hh_l0"])
        h1 = jnp.tanh(h0 @ params["w_ih_l1"].T + params["b_ih_l1"]
                      + h1 @ params["w_hh_l1"].T + params["b_hh_l1"])
    return h1 @ params["fc_w"].T + params["fc_b"]


if __name__ == "__main__":
    key = jax.random.PRNGKey(0)
    k_params, k_x = jax.random.split(key)
    params = init_params(k_params)
    prep = prepare_params(params)

    B, T, I = 2, 8, INPUT_SIZE
    x = jax.random.normal(k_x, (B, T, I), jnp.float32)

    out = jax.block_until_ready(rnn_forward(x, prep))
    ref = reference_forward(x, params)

    assert out.shape == (B, 1), out.shape
    # bf16 MXU operands drift slightly from the pure-f32 PyTorch reference over the
    # T-step tanh recurrence -> loose tolerance (typical observed error is ~1e-2).
    err = float(jnp.max(jnp.abs(out - ref)))
    assert err < 1e-1, f"max abs err vs f32 reference: {err}"

    print("KERNEL_OK")
</pallas_src>

<mosaic_0001>
module attributes {stable_mosaic.version = 11 : i64} {
  func.func @_rnn_kernel(%arg0: memref<8x8x13xf32, #tpu.memory_space<vmem>>, %arg1: memref<13x32xbf16, #tpu.memory_space<vmem>>, %arg2: memref<64x64xbf16, #tpu.memory_space<vmem>>, %arg3: memref<1x64xf32, #tpu.memory_space<vmem>>, %arg4: memref<32x32xbf16, #tpu.memory_space<vmem>>, %arg5: memref<1x32xf32, #tpu.memory_space<vmem>>, %arg6: memref<32x128xbf16, #tpu.memory_space<vmem>>, %arg7: memref<1x128xf32, #tpu.memory_space<vmem>>, %arg8: memref<8x128xf32, #tpu.memory_space<vmem>>, %arg9: memref<8x8x32xf32, #tpu.memory_space<vmem>>) attributes {dimension_semantics = [], scalar_prefetch = 0 : i64, scratch_operands = 1 : i64, tpu.core_type = #tpu.core_type<tc>} {
    %c0 = arith.constant 0 : index
    %c0_0 = arith.constant 0 : index
    %c0_1 = arith.constant 0 : index
    %0 = vector.load %arg0[%c0, %c0_0, %c0_1] : memref<8x8x13xf32, #tpu.memory_space<vmem>>, vector<8x8x13xf32>
    %1 = vector.shape_cast %0 : vector<8x8x13xf32> to vector<64x13xf32>
    %2 = arith.truncf %1 : vector<64x13xf32> to vector<64x13xbf16>
    %c0_2 = arith.constant 0 : index
    %c0_3 = arith.constant 0 : index
    %3 = vector.load %arg1[%c0_2, %c0_3] : memref<13x32xbf16, #tpu.memory_space<vmem>>, vector<13x32xbf16>
    %cst = arith.constant dense<0.000000e+00> : vector<64x32xf32>
    %4 = tpu.matmul %2, %3, %cst {dimension_numbers = #tpu.dot_dimension_numbers<[1], [0], [0], [1], [0, 0, 1, 1], [], []>} : vector<64x13xbf16>, vector<13x32xbf16>, vector<64x32xf32> -> vector<64x32xf32>
    %c0_4 = arith.constant 0 : index
    %c0_5 = arith.constant 0 : index
    %5 = vector.load %arg5[%c0_4, %c0_5] : memref<1x32xf32, #tpu.memory_space<vmem>>, vector<1x32xf32>
    %6 = vector.broadcast %5 : vector<1x32xf32> to vector<64x32xf32>
    %7 = arith.addf %4, %6 : vector<64x32xf32>
    %8 = vector.shape_cast %7 : vector<64x32xf32> to vector<8x8x32xf32>
    %c0_6 = arith.constant 0 : index
    %c0_7 = arith.constant 0 : index
    %c0_8 = arith.constant 0 : index
    %9 = vector.load %arg9[%c0_6, %c0_7, %c0_8] : memref<8x8x32xf32, #tpu.memory_space<vmem>>, vector<8x8x32xf32>
    tpu.vector_store %arg9[%c0_6, %c0_7, %c0_8], %8 {strides = array<i32>} : memref<8x8x32xf32, #tpu.memory_space<vmem>>, vector<8x8x32xf32>,
    %c0_9 = arith.constant 0 : index
    %c0_10 = arith.constant 0 : index
    %10 = vector.load %arg2[%c0_9, %c0_10] : memref<64x64xbf16, #tpu.memory_space<vmem>>, vector<64x64xbf16>
    %c0_11 = arith.constant 0 : index
    %c0_12 = arith.constant 0 : index
    %11 = vector.load %arg4[%c0_11, %c0_12] : memref<32x32xbf16, #tpu.memory_space<vmem>>, vector<32x32xbf16>
    %c0_13 = arith.constant 0 : index
    %c0_14 = arith.constant 0 : index
    %12 = vector.load %arg3[%c0_13, %c0_14] : memref<1x64xf32, #tpu.memory_space<vmem>>, vector<1x64xf32>
    %13 = vector.shape_cast %12 : vector<1x64xf32> to vector<1x64xf32>
    %14 = vector.broadcast %13 : vector<1x64xf32> to vector<8x64xf32>
    %cst_15 = arith.constant 0.000000e+00 : f32
    %15 = vector.broadcast %cst_15 : f32 to vector<8x64xf32>
    %16 = arith.truncf %15 : vector<8x64xf32> to vector<8x64xbf16>
    %cst_16 = arith.constant dense<0.000000e+00> : vector<8x64xf32>
    %17 = tpu.matmul %16, %10, %cst_16 {dimension_numbers = #tpu.dot_dimension_numbers<[1], [0], [0], [1], [0, 0, 1, 1], [], []>} : vector<8x64xbf16>, vector<64x64xbf16>, vector<8x64xf32> -> vector<8x64xf32>
    %18 = arith.addf %17, %14 : vector<8x64xf32>
    %c0_17 = arith.constant 0 : index
    %c0_18 = arith.constant 0 : index
    %c0_19 = arith.constant 0 : index
    %19 = vector.load %arg9[%c0_17, %c0_18, %c0_19] : memref<8x8x32xf32, #tpu.memory_space<vmem>>, vector<1x8x32xf32>
    %20 = vector.shape_cast %19 : vector<1x8x32xf32> to vector<8x32xf32>
    %21 = vector.extract_strided_slice %18 {offsets = [0, 0], sizes = [8, 32], strides = [1, 1]} : vector<8x64xf32> to vector<8x32xf32>
    %22 = arith.addf %20, %21 : vector<8x32xf32>
    %23 = math.tanh %22 : vector<8x32xf32>
    %24 = arith.truncf %23 : vector<8x32xf32> to vector<8x32xbf16>
    %cst_20 = arith.constant dense<0.000000e+00> : vector<8x32xf32>
    %25 = tpu.matmul %24, %11, %cst_20 {dimension_numbers = #tpu.dot_dimension_numbers<[1], [0], [0], [1], [0, 0, 1, 1], [], []>} : vector<8x32xbf16>, vector<32x32xbf16>, vector<8x32xf32> -> vector<8x32xf32>
    %26 = vector.extract_strided_slice %18 {offsets = [0, 32], sizes = [8, 32], strides = [1, 1]} : vector<8x64xf32> to vector<8x32xf32>
    %27 = arith.addf %25, %26 : vector<8x32xf32>
    %28 = math.tanh %27 : vector<8x32xf32>
    %29 = tpu.concatenate %23, %28 in 1 : vector<8x32xf32>, vector<8x32xf32> -> vector<8x64xf32>
    %30 = arith.truncf %29 : vector<8x64xf32> to vector<8x64xbf16>
    %cst_21 = arith.constant dense<0.000000e+00> : vector<8x64xf32>
    %31 = tpu.matmul %30, %10, %cst_21 {dimension_numbers = #tpu.dot_dimension_numbers<[1], [0], [0], [1], [0, 0, 1, 1], [], []>} : vector<8x64xbf16>, vector<64x64xbf16>, vector<8x64xf32> -> vector<8x64xf32>
    %32 = arith.addf %31, %14 : vector<8x64xf32>
    %c1 = arith.constant 1 : index
    %c0_22 = arith.constant 0 : index
    %c0_23 = arith.constant 0 : index
    %33 = vector.load %arg9[%c1, %c0_22, %c0_23] : memref<8x8x32xf32, #tpu.memory_space<vmem>>, vector<1x8x32xf32>
    %34 = vector.shape_cast %33 : vector<1x8x32xf32> to vector<8x32xf32>
    %35 = vector.extract_strided_slice %32 {offsets = [0, 0], sizes = [8, 32], strides = [1, 1]} : vector<8x64xf32> to vector<8x32xf32>
    %36 = arith.addf %34, %35 : vector<8x32xf32>
    %37 = math.tanh %36 : vector<8x32xf32>
    %38 = arith.truncf %37 : vector<8x32xf32> to vector<8x32xbf16>
    %cst_24 = arith.constant dense<0.000000e+00> : vector<8x32xf32>
    %39 = tpu.matmul %38, %11, %cst_24 {dimension_numbers = #tpu.dot_dimension_numbers<[1], [0], [0], [1], [0, 0, 1, 1], [], []>} : vector<8x32xbf16>, vector<32x32xbf16>, vector<8x32xf32> -> vector<8x32xf32>
    %40 = vector.extract_strided_slice %32 {offsets = [0, 32], sizes = [8, 32], strides = [1, 1]} : vector<8x64xf32> to vector<8x32xf32>
    %41 = arith.addf %39, %40 : vector<8x32xf32>
    %42 = math.tanh %41 : vector<8x32xf32>
    %43 = tpu.concatenate %37, %42 in 1 : vector<8x32xf32>, vector<8x32xf32> -> vector<8x64xf32>
    %44 = arith.truncf %43 : vector<8x64xf32> to vector<8x64xbf16>
    %cst_25 = arith.constant dense<0.000000e+00> : vector<8x64xf32>
    %45 = tpu.matmul %44, %10, %cst_25 {dimension_numbers = #tpu.dot_dimension_numbers<[1], [0], [0], [1], [0, 0, 1, 1], [], []>} : vector<8x64xbf16>, vector<64x64xbf16>, vector<8x64xf32> -> vector<8x64xf32>
    %46 = arith.addf %45, %14 : vector<8x64xf32>
    %c2 = arith.constant 2 : index
    %c0_26 = arith.constant 0 : index
    %c0_27 = arith.constant 0 : index
    %47 = vector.load %arg9[%c2, %c0_26, %c0_27] : memref<8x8x32xf32, #tpu.memory_space<vmem>>, vector<1x8x32xf32>
    %48 = vector.shape_cast %47 : vector<1x8x32xf32> to vector<8x32xf32>
    %49 = vector.extract_strided_slice %46 {offsets = [0, 0], sizes = [8, 32], strides = [1, 1]} : vector<8x64xf32> to vector<8x32xf32>
    %50 = arith.addf %48, %49 : vector<8x32xf32>
    %51 = math.tanh %50 : vector<8x32xf32>
    %52 = arith.truncf %51 : vector<8x32xf32> to vector<8x32xbf16>
    %cst_28 = arith.constant dense<0.000000e+00> : vector<8x32xf32>
    %53 = tpu.matmul %52, %11, %cst_28 {dimension_numbers = #tpu.dot_dimension_numbers<[1], [0], [0], [1], [0, 0, 1, 1], [], []>} : vector<8x32xbf16>, vector<32x32xbf16>, vector<8x32xf32> -> vector<8x32xf32>
    %54 = vector.extract_strided_slice %46 {offsets = [0, 32], sizes = [8, 32], strides = [1, 1]} : vector<8x64xf32> to vector<8x32xf32>
    %55 = arith.addf %53, %54 : vector<8x32xf32>
    %56 = math.tanh %55 : vector<8x32xf32>
    %57 = tpu.concatenate %51, %56 in 1 : vector<8x32xf32>, vector<8x32xf32> -> vector<8x64xf32>
    %58 = arith.truncf %57 : vector<8x64xf32> to vector<8x64xbf16>
    %cst_29 = arith.constant dense<0.000000e+00> : vector<8x64xf32>
    %59 = tpu.matmul %58, %10, %cst_29 {dimension_numbers = #tpu.dot_dimension_numbers<[1], [0], [0], [1], [0, 0, 1, 1], [], []>} : vector<8x64xbf16>, vector<64x64xbf16>, vector<8x64xf32> -> vector<8x64xf32>
    %60 = arith.addf %59, %14 : vector<8x64xf32>
    %c3 = arith.constant 3 : index
    %c0_30 = arith.constant 0 : index
    %c0_31 = arith.constant 0 : index
    %61 = vector.load %arg9[%c3, %c0_30, %c0_31] : memref<8x8x32xf32, #tpu.memory_space<vmem>>, vector<1x8x32xf32>
    %62 = vector.shape_cast %61 : vector<1x8x32xf32> to vector<8x32xf32>
    %63 = vector.extract_strided_slice %60 {offsets = [0, 0], sizes = [8, 32], strides = [1, 1]} : vector<8x64xf32> to vector<8x32xf32>
    %64 = arith.addf %62, %63 : vector<8x32xf32>
    %65 = math.tanh %64 : vector<8x32xf32>
    %66 = arith.truncf %65 : vector<8x32xf32> to vector<8x32xbf16>
    %cst_32 = arith.constant dense<0.000000e+00> : vector<8x32xf32>
    %67 = tpu.matmul %66, %11, %cst_32 {dimension_numbers = #tpu.dot_dimension_numbers<[1], [0], [0], [1], [0, 0, 1, 1], [], []>} : vector<8x32xbf16>, vector<32x32xbf16>, vector<8x32xf32> -> vector<8x32xf32>
    %68 = vector.extract_strided_slice %60 {offsets = [0, 32], sizes = [8, 32], strides = [1, 1]} : vector<8x64xf32> to vector<8x32xf32>
    %69 = arith.addf %67, %68 : vector<8x32xf32>
    %70 = math.tanh %69 : vector<8x32xf32>
    %71 = tpu.concatenate %65, %70 in 1 : vector<8x32xf32>, vector<8x32xf32> -> vector<8x64xf32>
    %72 = arith.truncf %71 : vector<8x64xf32> to vector<8x64xbf16>
    %cst_33 = arith.constant dense<0.000000e+00> : vector<8x64xf32>
    %73 = tpu.matmul %72, %10, %cst_33 {dimension_numbers = #tpu.dot_dimension_numbers<[1], [0], [0], [1], [0, 0, 1, 1], [], []>} : vector<8x64xbf16>, vector<64x64xbf16>, vector<8x64xf32> -> vector<8x64xf32>
    %74 = arith.addf %73, %14 : vector<8x64xf32>
    %c4 = arith.constant 4 : index
    %c0_34 = arith.constant 0 : index
    %c0_35 = arith.constant 0 : index
    %75 = vector.load %arg9[%c4, %c0_34, %c0_35] : memref<8x8x32xf32, #tpu.memory_space<vmem>>, vector<1x8x32xf32>
    %76 = vector.shape_cast %75 : vector<1x8x32xf32> to vector<8x32xf32>
    %77 = vector.extract_strided_slice %74 {offsets = [0, 0], sizes = [8, 32], strides = [1, 1]} : vector<8x64xf32> to vector<8x32xf32>
    %78 = arith.addf %76, %77 : vector<8x32xf32>
    %79 = math.tanh %78 : vector<8x32xf32>
    %80 = arith.truncf %79 : vector<8x32xf32> to vector<8x32xbf16>
    %cst_36 = arith.constant dense<0.000000e+00> : vector<8x32xf32>
    %81 = tpu.matmul %80, %11, %cst_36 {dimension_numbers = #tpu.dot_dimension_numbers<[1], [0], [0], [1], [0, 0, 1, 1], [], []>} : vector<8x32xbf16>, vector<32x32xbf16>, vector<8x32xf32> -> vector<8x32xf32>
    %82 = vector.extract_strided_slice %74 {offsets = [0, 32], sizes = [8, 32], strides = [1, 1]} : vector<8x64xf32> to vector<8x32xf32>
    %83 = arith.addf %81, %82 : vector<8x32xf32>
    %84 = math.tanh %83 : vector<8x32xf32>
    %85 = tpu.concatenate %79, %84 in 1 : vector<8x32xf32>, vector<8x32xf32> -> vector<8x64xf32>
    %86 = arith.truncf %85 : vector<8x64xf32> to vector<8x64xbf16>
    %cst_37 = arith.constant dense<0.000000e+00> : vector<8x64xf32>
    %87 = tpu.matmul %86, %10, %cst_37 {dimension_numbers = #tpu.dot_dimension_numbers<[1], [0], [0], [1], [0, 0, 1, 1], [], []>} : vector<8x64xbf16>, vector<64x64xbf16>, vector<8x64xf32> -> vector<8x64xf32>
    %88 = arith.addf %87, %14 : vector<8x64xf32>
    %c5 = arith.constant 5 : index
    %c0_38 = arith.constant 0 : index
    %c0_39 = arith.constant 0 : index
    %89 = vector.load %arg9[%c5, %c0_38, %c0_39] : memref<8x8x32xf32, #tpu.memory_space<vmem>>, vector<1x8x32xf32>
    %90 = vector.shape_cast %89 : vector<1x8x32xf32> to vector<8x32xf32>
    %91 = vector.extract_strided_slice %88 {offsets = [0, 0], sizes = [8, 32], strides = [1, 1]} : vector<8x64xf32> to vector<8x32xf32>
    %92 = arith.addf %90, %91 : vector<8x32xf32>
    %93 = math.tanh %92 : vector<8x32xf32>
    %94 = arith.truncf %93 : vector<8x32xf32> to vector<8x32xbf16>
    %cst_40 = arith.constant dense<0.000000e+00> : vector<8x32xf32>
    %95 = tpu.matmul %94, %11, %cst_40 {dimension_numbers = #tpu.dot_dimension_numbers<[1], [0], [0], [1], [0, 0, 1, 1], [], []>} : vector<8x32xbf16>, vector<32x32xbf16>, vector<8x32xf32> -> vector<8x32xf32>
    %96 = vector.extract_strided_slice %88 {offsets = [0, 32], sizes = [8, 32], strides = [1, 1]} : vector<8x64xf32> to vector<8x32xf32>
    %97 = arith.addf %95, %96 : vector<8x32xf32>
    %98 = math.tanh %97 : vector<8x32xf32>
    %99 = tpu.concatenate %93, %98 in 1 : vector<8x32xf32>, vector<8x32xf32> -> vector<8x64xf32>
    %100 = arith.truncf %99 : vector<8x64xf32> to vector<8x64xbf16>
    %cst_41 = arith.constant dense<0.000000e+00> : vector<8x64xf32>
    %101 = tpu.matmul %100, %10, %cst_41 {dimension_numbers = #tpu.dot_dimension_numbers<[1], [0], [0], [1], [0, 0, 1, 1], [], []>} : vector<8x64xbf16>, vector<64x64xbf16>, vector<8x64xf32> -> vector<8x64xf32>
    %102 = arith.addf %101, %14 : vector<8x64xf32>
    %c6 = arith.constant 6 : index
    %c0_42 = arith.constant 0 : index
    %c0_43 = arith.constant 0 : index
    %103 = vector.load %arg9[%c6, %c0_42, %c0_43] : memref<8x8x32xf32, #tpu.memory_space<vmem>>, vector<1x8x32xf32>
    %104 = vector.shape_cast %103 : vector<1x8x32xf32> to vector<8x32xf32>
    %105 = vector.extract_strided_slice %102 {offsets = [0, 0], sizes = [8, 32], strides = [1, 1]} : vector<8x64xf32> to vector<8x32xf32>
    %106 = arith.addf %104, %105 : vector<8x32xf32>
    %107 = math.tanh %106 : vector<8x32xf32>
    %108 = arith.truncf %107 : vector<8x32xf32> to vector<8x32xbf16>
    %cst_44 = arith.constant dense<0.000000e+00> : vector<8x32xf32>
    %109 = tpu.matmul %108, %11, %cst_44 {dimension_numbers = #tpu.dot_dimension_numbers<[1], [0], [0], [1], [0, 0, 1, 1], [], []>} : vector<8x32xbf16>, vector<32x32xbf16>, vector<8x32xf32> -> vector<8x32xf32>
    %110 = vector.extract_strided_slice %102 {offsets = [0, 32], sizes = [8, 32], strides = [1, 1]} : vector<8x64xf32> to vector<8x32xf32>
    %111 = arith.addf %109, %110 : vector<8x32xf32>
    %112 = math.tanh %111 : vector<8x32xf32>
    %113 = tpu.concatenate %107, %112 in 1 : vector<8x32xf32>, vector<8x32xf32> -> vector<8x64xf32>
    %114 = arith.truncf %113 : vector<8x64xf32> to vector<8x64xbf16>
    %cst_45 = arith.constant dense<0.000000e+00> : vector<8x64xf32>
    %115 = tpu.matmul %114, %10, %cst_45 {dimension_numbers = #tpu.dot_dimension_numbers<[1], [0], [0], [1], [0, 0, 1, 1], [], []>} : vector<8x64xbf16>, vector<64x64xbf16>, vector<8x64xf32> -> vector<8x64xf32>
    %116 = arith.addf %115, %14 : vector<8x64xf32>
    %c7 = arith.constant 7 : index
    %c0_46 = arith.constant 0 : index
    %c0_47 = arith.constant 0 : index
    %117 = vector.load %arg9[%c7, %c0_46, %c0_47] : memref<8x8x32xf32, #tpu.memory_space<vmem>>, vector<1x8x32xf32>
    %118 = vector.shape_cast %117 : vector<1x8x32xf32> to vector<8x32xf32>
    %119 = vector.extract_strided_slice %116 {offsets = [0, 0], sizes = [8, 32], strides = [1, 1]} : vector<8x64xf32> to vector<8x32xf32>
    %120 = arith.addf %118, %119 : vector<8x32xf32>
    %121 = math.tanh %120 : vector<8x32xf32>
    %122 = arith.truncf %121 : vector<8x32xf32> to vector<8x32xbf16>
    %cst_48 = arith.constant dense<0.000000e+00> : vector<8x32xf32>
    %123 = tpu.matmul %122, %11, %cst_48 {dimension_numbers = #tpu.dot_dimension_numbers<[1], [0], [0], [1], [0, 0, 1, 1], [], []>} : vector<8x32xbf16>, vector<32x32xbf16>, vector<8x32xf32> -> vector<8x32xf32>
    %124 = vector.extract_strided_slice %116 {offsets = [0, 32], sizes = [8, 32], strides = [1, 1]} : vector<8x64xf32> to vector<8x32xf32>
    %125 = arith.addf %123, %124 : vector<8x32xf32>
    %126 = math.tanh %125 : vector<8x32xf32>
    %127 = tpu.concatenate %121, %126 in 1 : vector<8x32xf32>, vector<8x32xf32> -> vector<8x64xf32>
    %128 = vector.extract_strided_slice %127 {offsets = [0, 32], sizes = [8, 32], strides = [1, 1]} : vector<8x64xf32> to vector<8x32xf32>
    %129 = arith.truncf %128 : vector<8x32xf32> to vector<8x32xbf16>
    %c0_49 = arith.constant 0 : index
    %c0_50 = arith.constant 0 : index
    %130 = vector.load %arg6[%c0_49, %c0_50] : memref<32x128xbf16, #tpu.memory_space<vmem>>, vector<32x128xbf16>
    %cst_51 = arith.constant dense<0.000000e+00> : vector<8x128xf32>
    %131 = tpu.matmul %129, %130, %cst_51 {dimension_numbers = #tpu.dot_dimension_numbers<[1], [0], [0], [1], [0, 0, 1, 1], [], []>} : vector<8x32xbf16>, vector<32x128xbf16>, vector<8x128xf32> -> vector<8x128xf32>
    %c0_52 = arith.constant 0 : index
    %c0_53 = arith.constant 0 : index
    %132 = vector.load %arg7[%c0_52, %c0_53] : memref<1x128xf32, #tpu.memory_space<vmem>>, vector<1x128xf32>
    %133 = vector.broadcast %132 : vector<1x128xf32> to vector<8x128xf32>
    %134 = arith.addf %131, %133 : vector<8x128xf32>
    %c0_54 = arith.constant 0 : index
    %c0_55 = arith.constant 0 : index
    %135 = vector.load %arg8[%c0_54, %c0_55] : memref<8x128xf32, #tpu.memory_space<vmem>>, vector<8x128xf32>
    tpu.vector_store %arg8[%c0_54, %c0_55], %134 {strides = array<i32>} : memref<8x128xf32, #tpu.memory_space<vmem>>, vector<8x128xf32>,
    return
  }
}

</mosaic_0001>

<llo_original>
// kernel: rnn_forward.1
$region0: #{rnn_forward.1}
  #allocation0 [shape = 'u32[]', space=smem, size = 0x4, offset = 0x4, fixed_abs, tag = 'smem constant byte address 0x4 - core index']
  #allocation1 [shape = 'u32[72,128]{1,0:T(1,128)}', space=vmem, size = 0x9000, scoped, tag = 'internal scratch']
  #allocation2 [shape = 'f32[8,8,32]{2,1,0:T(8,128)}', space=vmem, size = 0x8000, scoped, tag = 'scratch operand']
  %s0 = inlined_call_operand.vmem [shape: f32[8,8,13], index: 0, kind: input, shape index: {}]
  %s1 = inlined_call_operand.vmem [shape: bf16[13,32], index: 1, kind: input, shape index: {}]
  %s2 = inlined_call_operand.vmem [shape: bf16[64,64], index: 2, kind: input, shape index: {}]
  %s3 = inlined_call_operand.vmem [shape: f32[1,64], index: 3, kind: input, shape index: {}]
  %s4 = inlined_call_operand.vmem [shape: bf16[32,32], index: 4, kind: input, shape index: {}]
  %s5 = inlined_call_operand.vmem [shape: f32[1,32], index: 5, kind: input, shape index: {}]
  %s6 = inlined_call_operand.vmem [shape: bf16[32,128], index: 6, kind: input, shape index: {}]
  %s7 = inlined_call_operand.vmem [shape: f32[1,128], index: 7, kind: input, shape index: {}]
  %s8 = inlined_call_operand.vmem [shape: f32[8,128], index: 8, kind: output, shape index: {}]
  %s9 = sld [smem:[#allocation0]]
  $region42: #{rnn_forward.1} parent=0
    _
  %s11 = ssub.s32 1, %s9
  %s12 = scalar_select 0, %s11, %s9
  // Predicated region
  $region2: #{rnn_forward.1} parent=0 // pred_check
    _
  $region3: #{rnn_forward.1} parent=0 // pred_check_branch
    %14 = sbr.rel (0) target = $region5
  $region4: #{rnn_forward.1} parent=0 // pred_region
    _
  $region5: #{rnn_forward.1} parent=0 // pred_fallthru
    _
  // Predicated region
  $region6: #{rnn_forward.1} parent=0 // pred_check
    _
  $region7: #{rnn_forward.1} parent=0 // pred_check_branch
    %16 = sbr.rel (0) target = $region9
  $region8: #{rnn_forward.1} parent=0 // pred_region
    _
  $region9: #{rnn_forward.1} parent=0 // pred_fallthru
    _
  // Predicated region
  $region10: #{rnn_forward.1} parent=0 // pred_check
    _
  $region11: #{rnn_forward.1} parent=0 // pred_check_branch
    %18 = sbr.rel (0) target = $region13
  $region12: #{rnn_forward.1} parent=0 // pred_region
    _
  $region13: #{rnn_forward.1} parent=0 // pred_fallthru
    _
  // Predicated region
  $region14: #{rnn_forward.1} parent=0 // pred_check
    _
  $region15: #{rnn_forward.1} parent=0 // pred_check_branch
    %20 = sbr.rel (0) target = $region17
  $region16: #{rnn_forward.1} parent=0 // pred_region
    _
  $region17: #{rnn_forward.1} parent=0 // pred_fallthru
    _
  // Predicated region
  $region18: #{rnn_forward.1} parent=0 // pred_check
    _
  $region19: #{rnn_forward.1} parent=0 // pred_check_branch
    %22 = sbr.rel (0) target = $region21
  $region20: #{rnn_forward.1} parent=0 // pred_region
    _
  $region21: #{rnn_forward.1} parent=0 // pred_fallthru
    _
  // Predicated region
  $region22: #{rnn_forward.1} parent=0 // pred_check
    _
  $region23: #{rnn_forward.1} parent=0 // pred_check_branch
    %24 = sbr.rel (0) target = $region25
  $region24: #{rnn_forward.1} parent=0 // pred_region
    _
  $region25: #{rnn_forward.1} parent=0 // pred_fallthru
    _
  // Predicated region
  $region26: #{rnn_forward.1} parent=0 // pred_check
    _
  $region27: #{rnn_forward.1} parent=0 // pred_check_branch
    %26 = sbr.rel (0) target = $region29
  $region28: #{rnn_forward.1} parent=0 // pred_region
    _
  $region29: #{rnn_forward.1} parent=0 // pred_fallthru
    _
  // Predicated region
  $region30: #{rnn_forward.1} parent=0 // pred_check
    _
  $region31: #{rnn_forward.1} parent=0 // pred_check_branch
    %28 = sbr.rel (0) target = $region33
  $region32: #{rnn_forward.1} parent=0 // pred_region
    _
  $region33: #{rnn_forward.1} parent=0 // pred_fallthru
    _
  %v30 = vld [vmem:[%s0] sm:$0xff]
  %v31 = vld [vmem:[%s0 + $0x8] sm:$0xff]
  %v32 = vld [vmem:[%s0 + $0x10] sm:$0xff]
  %v33 = vld [vmem:[%s0 + $0x18] sm:$0xff]
  %v34 = vld [vmem:[%s0 + $0x20] sm:$0xff]
  %v35 = vld [vmem:[%s0 + $0x28] sm:$0xff]
  %v36 = vld [vmem:[%s0 + $0x30] sm:$0xff]
  %v37 = vld [vmem:[%s0 + $0x38] sm:$0xff]
  %v38 = vpack.c.bf16 %v31, %v30
  %v39 = vpack.c.bf16 %v33, %v32
  %v40 = vpack.c.bf16 %v35, %v34
  %v41 = vpack.c.bf16 %v37, %v36
  %v42 = vld [vmem:[%s1] sm:$0xf]
  %v43 = vld [vmem:[%s1 + $0x4] sm:$0x7]
  %v44 = vld [vmem:[%s5] sm:$0x1]
  %v46 = vperm.slane %v44, 0
  %v50 = vunpack.c.l.b16 %v42
  %v51 = vunpack.c.l.b16 %v43
  %v52 = vpack.c.b16 %v51, %v50
  %vm53 = vcmask 105472
  %v55 = vsel %vm53, %v38, 0
  %v58 = vsel %vm53, %v39, 0
  %v61 = vsel %vm53, %v40, 0
  %v64 = vsel %vm53, %v41, 0
  %vm66 = vcmask 1045504
  %vm67 = vcmask 1046528
  %v68 = vsel %vm66, 4294967295, 65535
  %v69 = vsel %vm67, %v68, 0
  %v71 = vand.u32 %v52, %v69
  %73 = vmatpush.bf16.msra.mxu0 0
  %74 = vmatpush.bf16.msra.mxu0 0
  %75 = vmatpush.bf16.msra.mxu0 0
  %76 = vmatpush.bf16.msra.mxu0 0
  %77 = vmatpush.bf16.msra.mxu0 0
  %78 = vmatpush.bf16.msra.mxu0 0
  %79 = vmatpush.bf16.msra.mxu0 0
  %80 = vmatpush.bf16.msra.mxu0 %v71
  %81 = vmatmul.bf16.gmra.mxu0 %v55
  %v82 = vpop.f32.mrf.mxu0
  %v83 = vadd.f32 %v46, %v82
  %v84 = vpop.f32.mrf.mxu0
  %v85 = vadd.f32 %v46, %v84
  %86 = vmatmul.bf16.gmra.mxu0 %v58
  %v87 = vpop.f32.mrf.mxu0
  %v88 = vadd.f32 %v46, %v87
  %v89 = vpop.f32.mrf.mxu0
  %v90 = vadd.f32 %v46, %v89
  %91 = vmatmul.bf16.gmra.mxu0 %v61
  %v92 = vpop.f32.mrf.mxu0
  %v93 = vadd.f32 %v46, %v92
  %v94 = vpop.f32.mrf.mxu0
  %v95 = vadd.f32 %v46, %v94
  %96 = vmatmul.bf16.gmra.mxu0 %v64
  %v97 = vpop.f32.mrf.mxu0
  %v98 = vadd.f32 %v46, %v97
  %v99 = vpop.f32.mrf.mxu0
  %v100 = vadd.f32 %v46, %v99
  %101 = vdwg.mxu0
  %vm102 = vcmask 261120
  %103 = vst.msk [vmem:[#allocation2] sm:$0xff] %vm102, %v83
  %104 = vst.msk [vmem:[#allocation2 + $0x8] sm:$0xff] %vm102, %v85
  %105 = vst.msk [vmem:[#allocation2 + $0x10] sm:$0xff] %vm102, %v88
  %106 = vst.msk [vmem:[#allocation2 + $0x18] sm:$0xff] %vm102, %v90
  %107 = vst.msk [vmem:[#allocation2 + $0x20] sm:$0xff] %vm102, %v93
  %108 = vst.msk [vmem:[#allocation2 + $0x28] sm:$0xff] %vm102, %v95
  %109 = vst.msk [vmem:[#allocation2 + $0x30] sm:$0xff] %vm102, %v98
  %110 = vst.msk [vmem:[#allocation2 + $0x38] sm:$0xff] %vm102, %v100
  %v111 = vld [vmem:[%s2] sm:$0xf]
  %v112 = vld [vmem:[%s2 + $0x4] sm:$0xf]
  %v113 = vld [vmem:[%s2 + $0x8] sm:$0xf]
  %v114 = vld [vmem:[%s2 + $0xc] sm:$0xf]
  %v115 = vld [vmem:[%s2 + $0x10] sm:$0xf]
  %v116 = vld [vmem:[%s2 + $0x14] sm:$0xf]
  %v117 = vld [vmem:[%s2 + $0x18] sm:$0xf]
  %v118 = vld [vmem:[%s2 + $0x1c] sm:$0xf]
  %v119 = vld [vmem:[%s4] sm:$0xf]
  %v120 = vld [vmem:[%s4 + $0x4] sm:$0xf]
  %v121 = vld [vmem:[%s4 + $0x8] sm:$0xf]
  %v122 = vld [vmem:[%s4 + $0xc] sm:$0xf]
  %v123 = vld [vmem:[%s3] sm:$0x1]
  %v125 = vperm.slane %v123, 0
  %v135 = vunpack.c.l.b16 %v111
  %v136 = vunpack.c.l.b16 %v112
  %v137 = vunpack.c.l.b16 %v113
  %v138 = vunpack.c.l.b16 %v114
  %v139 = vunpack.c.l.b16 %v115
  %v140 = vunpack.c.l.b16 %v116
  %v141 = vunpack.c.l.b16 %v117
  %v142 = vunpack.c.l.b16 %v118
  %v143 = vpack.c.b16 %v136, %v135
  %v144 = vpack.c.b16 %v138, %v137
  %v145 = vpack.c.b16 %v140, %v139
  %v146 = vpack.c.b16 %v142, %v141
  %vm151 = vcmask 523264
  %v153 = vsel %vm151, 0, 0
  %155 = vmatpush.bf16.msra.mxu0 0
  %156 = vmatpush.bf16.msra.mxu0 0
  %157 = vmatpush.bf16.msra.mxu0 0
  %158 = vmatpush.bf16.msra.mxu0 0
  %159 = vmatpush.bf16.msra.mxu0 %v146
  %160 = vmatpush.bf16.msra.mxu0 %v145
  %161 = vmatpush.bf16.msra.mxu0 %v144
  %162 = vmatpush.bf16.msra.mxu0 %v143
  %163 = vmatmul.bf16.gmra.mxu0 %v153
  %v164 = vpop.f32.mrf.mxu0
  %v165 = vadd.f32 %v125, %v164
  %v166 = vpop.f32.mrf.mxu0
  %167 = vdwg.mxu0
  %v168 = vld [vmem:[#allocation2] sm:$0xff]
  %v169 = vadd.f32 %v168, %v165
  %v170 = vtanh.pop %v169
  %v171 = vpack.c.bf16 %v170, %v170
  %v176 = vunpack.c.l.b16 %v119
  %v177 = vunpack.c.l.b16 %v120
  %v178 = vunpack.c.l.b16 %v121
  %v179 = vunpack.c.l.b16 %v122
  %v180 = vpack.c.b16 %v177, %v176
  %v181 = vpack.c.b16 %v179, %v178
  %185 = vrot.lane.b32.xlu0 %v165, 96
  %v186 = vpop.permute.xlu0 %185
  %v189 = vsel %vm102, %v171, 0
  %191 = vmatpush.bf16.msra.mxu0 0
  %192 = vmatpush.bf16.msra.mxu0 0
  %193 = vmatpush.bf16.msra.mxu0 0
  %194 = vmatpush.bf16.msra.mxu0 0
  %195 = vmatpush.bf16.msra.mxu0 0
  %196 = vmatpush.bf16.msra.mxu0 0
  %197 = vmatpush.bf16.msra.mxu0 %v181
  %198 = vmatpush.bf16.msra.mxu0 %v180
  %199 = vmatmul.bf16.gmra.mxu0 %v189
  %v200 = vpop.f32.mrf.mxu0
  %v201 = vadd.f32 %v186, %v200
  %v202 = vpop.f32.mrf.mxu0
  %203 = vdwg.mxu0
  %v204 = vtanh.pop %v201
  %206 = vrot.lane.b32.xlu0 %v204, 32
  %v207 = vpop.permute.xlu0 %206
  %v209 = vsel %vm102, %v170, %v207
  %v210 = vpack.c.bf16 %v209, %v209
  %v212 = vsel %vm151, %v210, 0
  %214 = vmatpush.bf16.msra.mxu0 0
  %215 = vmatpush.bf16.msra.mxu0 0
  %216 = vmatpush.bf16.msra.mxu0 0
  %217 = vmatpush.bf16.msra.mxu0 0
  %218 = vmatpush.bf16.msra.mxu0 %v146
  %219 = vmatpush.bf16.msra.mxu0 %v145
  %220 = vmatpush.bf16.msra.mxu0 %v144
  %221 = vmatpush.bf16.msra.mxu0 %v143
  %222 = vmatmul.bf16.gmra.mxu0 %v212
  %v223 = vpop.f32.mrf.mxu0
  %v224 = vadd.f32 %v125, %v223
  %v225 = vpop.f32.mrf.mxu0
  %226 = vdwg.mxu0
  %s227 = scalar_lea.vmem [#allocation2], 8
  %v228 = vld [vmem:[%s227] sm:$0xff]
  %v229 = vadd.f32 %v228, %v224
  %v230 = vtanh.pop %v229
  %v231 = vpack.c.bf16 %v230, %v230
  %233 = vrot.lane.b32.xlu0 %v224, 96
  %v234 = vpop.permute.xlu0 %233
  %v237 = vsel %vm102, %v231, 0
  %239 = vmatpush.bf16.msra.mxu0 0
  %240 = vmatpush.bf16.msra.mxu0 0
  %241 = vmatpush.bf16.msra.mxu0 0
  %242 = vmatpush.bf16.msra.mxu0 0
  %243 = vmatpush.bf16.msra.mxu0 0
  %244 = vmatpush.bf16.msra.mxu0 0
  %245 = vmatpush.bf16.msra.mxu0 %v181
  %246 = vmatpush.bf16.msra.mxu0 %v180
  %247 = vmatmul.bf16.gmra.mxu0 %v237
  %v248 = vpop.f32.mrf.mxu0
  %v249 = vadd.f32 %v234, %v248
  %v250 = vpop.f32.mrf.mxu0
  %251 = vdwg.mxu0
  %v252 = vtanh.pop %v249
  %254 = vrot.lane.b32.xlu0 %v252, 32
  %v255 = vpop.permute.xlu0 %254
  %v257 = vsel %vm102, %v230, %v255
  %v258 = vpack.c.bf16 %v257, %v257
  %v260 = vsel %vm151, %v258, 0
  %262 = vmatpush.bf16.msra.mxu0 0
  %263 = vmatpush.bf16.msra.mxu0 0
  %264 = vmatpush.bf16.msra.mxu0 0
  %265 = vmatpush.bf16.msra.mxu0 0
  %266 = vmatpush.bf16.msra.mxu0 %v146
  %267 = vmatpush.bf16.msra.mxu0 %v145
  %268 = vmatpush.bf16.msra.mxu0 %v144
  %269 = vmatpush.bf16.msra.mxu0 %v143
  %270 = vmatmul.bf16.gmra.mxu0 %v260
  %v271 = vpop.f32.mrf.mxu0
  %v272 = vadd.f32 %v125, %v271
  %v273 = vpop.f32.mrf.mxu0
  %274 = vdwg.mxu0
  %s275 = scalar_lea.vmem [#allocation2], 16
  %v276 = vld [vmem:[%s275] sm:$0xff]
  %v277 = vadd.f32 %v276, %v272
  %v278 = vtanh.pop %v277
  %v279 = vpack.c.bf16 %v278, %v278
  %281 = vrot.lane.b32.xlu0 %v272, 96
  %v282 = vpop.permute.xlu0 %281
  %v285 = vsel %vm102, %v279, 0
  %287 = vmatpush.bf16.msra.mxu0 0
  %288 = vmatpush.bf16.msra.mxu0 0
  %289 = vmatpush.bf16.msra.mxu0 0
  %290 = vmatpush.bf16.msra.mxu0 0
  %291 = vmatpush.bf16.msra.mxu0 0
  %292 = vmatpush.bf16.msra.mxu0 0
  %293 = vmatpush.bf16.msra.mxu0 %v181
  %294 = vmatpush.bf16.msra.mxu0 %v180
  %295 = vmatmul.bf16.gmra.mxu0 %v285
  %v296 = vpop.f32.mrf.mxu0
  %v297 = vadd.f32 %v282, %v296
  %v298 = vpop.f32.mrf.mxu0
  %299 = vdwg.mxu0
  %v300 = vtanh.pop %v297
  %302 = vrot.lane.b32.xlu0 %v300, 32
  %v303 = vpop.permute.xlu0 %302
  %v305 = vsel %vm102, %v278, %v303
  %v306 = vpack.c.bf16 %v305, %v305
  %v308 = vsel %vm151, %v306, 0
  %310 = vmatpush.bf16.msra.mxu0 0
  %311 = vmatpush.bf16.msra.mxu0 0
  %312 = vmatpush.bf16.msra.mxu0 0
  %313 = vmatpush.bf16.msra.mxu0 0
  %314 = vmatpush.bf16.msra.mxu0 %v146
  %315 = vmatpush.bf16.msra.mxu0 %v145
  %316 = vmatpush.bf16.msra.mxu0 %v144
  %317 = vmatpush.bf16.msra.mxu0 %v143
  %318 = vmatmul.bf16.gmra.mxu0 %v308
  %v319 = vpop.f32.mrf.mxu0
  %v320 = vadd.f32 %v125, %v319
  %v321 = vpop.f32.mrf.mxu0
  %322 = vdwg.mxu0
  %s323 = scalar_lea.vmem [#allocation2], 24
  %v324 = vld [vmem:[%s323] sm:$0xff]
  %v325 = vadd.f32 %v324, %v320
  %v326 = vtanh.pop %v325
  %v327 = vpack.c.bf16 %v326, %v326
  %329 = vrot.lane.b32.xlu0 %v320, 96
  %v330 = vpop.permute.xlu0 %329
  %v333 = vsel %vm102, %v327, 0
  %335 = vmatpush.bf16.msra.mxu0 0
  %336 = vmatpush.bf16.msra.mxu0 0
  %337 = vmatpush.bf16.msra.mxu0 0
  %338 = vmatpush.bf16.msra.mxu0 0
  %339 = vmatpush.bf16.msra.mxu0 0
  %340 = vmatpush.bf16.msra.mxu0 0
  %341 = vmatpush.bf16.msra.mxu0 %v181
  %342 = vmatpush.bf16.msra.mxu0 %v180
  %343 = vmatmul.bf16.gmra.mxu0 %v333
  %v344 = vpop.f32.mrf.mxu0
  %v345 = vadd.f32 %v330, %v344
  %v346 = vpop.f32.mrf.mxu0
  %347 = vdwg.mxu0
  %v348 = vtanh.pop %v345
  %350 = vrot.lane.b32.xlu0 %v348, 32
  %v351 = vpop.permute.xlu0 %350
  %v353 = vsel %vm102, %v326, %v351
  %v354 = vpack.c.bf16 %v353, %v353
  %v356 = vsel %vm151, %v354, 0
  %358 = vmatpush.bf16.msra.mxu0 0
  %359 = vmatpush.bf16.msra.mxu0 0
  %360 = vmatpush.bf16.msra.mxu0 0
  %361 = vmatpush.bf16.msra.mxu0 0
  %362 = vmatpush.bf16.msra.mxu0 %v146
  %363 = vmatpush.bf16.msra.mxu0 %v145
  %364 = vmatpush.bf16.msra.mxu0 %v144
  %365 = vmatpush.bf16.msra.mxu0 %v143
  %366 = vmatmul.bf16.gmra.mxu0 %v356
  %v367 = vpop.f32.mrf.mxu0
  %v368 = vadd.f32 %v125, %v367
  %v369 = vpop.f32.mrf.mxu0
  %370 = vdwg.mxu0
  %s371 = scalar_lea.vmem [#allocation2], 32
  %v372 = vld [vmem:[%s371] sm:$0xff]
  %v373 = vadd.f32 %v372, %v368
  %v374 = vtanh.pop %v373
  %v375 = vpack.c.bf16 %v374, %v374
  %377 = vrot.lane.b32.xlu0 %v368, 96
  %v378 = vpop.permute.xlu0 %377
  %v381 = vsel %vm102, %v375, 0
  %383 = vmatpush.bf16.msra.mxu0 0
  %384 = vmatpush.bf16.msra.mxu0 0
  %385 = vmatpush.bf16.msra.mxu0 0
  %386 = vmatpush.bf16.msra.mxu0 0
  %387 = vmatpush.bf16.msra.mxu0 0
  %388 = vmatpush.bf16.msra.mxu0 0
  %389 = vmatpush.bf16.msra.mxu0 %v181
  %390 = vmatpush.bf16.msra.mxu0 %v180
  %391 = vmatmul.bf16.gmra.mxu0 %v381
  %v392 = vpop.f32.mrf.mxu0
  %v393 = vadd.f32 %v378, %v392
  %v394 = vpop.f32.mrf.mxu0
  %395 = vdwg.mxu0
  %v396 = vtanh.pop %v393
  %398 = vrot.lane.b32.xlu0 %v396, 32
  %v399 = vpop.permute.xlu0 %398
  %v401 = vsel %vm102, %v374, %v399
  %v402 = vpack.c.bf16 %v401, %v401
  %v404 = vsel %vm151, %v402, 0
  %406 = vmatpush.bf16.msra.mxu0 0
  %407 = vmatpush.bf16.msra.mxu0 0
  %408 = vmatpush.bf16.msra.mxu0 0
  %409 = vmatpush.bf16.msra.mxu0 0
  %410 = vmatpush.bf16.msra.mxu0 %v146
  %411 = vmatpush.bf16.msra.mxu0 %v145
  %412 = vmatpush.bf16.msra.mxu0 %v144
  %413 = vmatpush.bf16.msra.mxu0 %v143
  %414 = vmatmul.bf16.gmra.mxu0 %v404
  %v415 = vpop.f32.mrf.mxu0
  %v416 = vadd.f32 %v125, %v415
  %v417 = vpop.f32.mrf.mxu0
  %418 = vdwg.mxu0
  %s419 = scalar_lea.vmem [#allocation2], 40
  %v420 = vld [vmem:[%s419] sm:$0xff]
  %v421 = vadd.f32 %v420, %v416
  %v422 = vtanh.pop %v421
  %v423 = vpack.c.bf16 %v422, %v422
  %425 = vrot.lane.b32.xlu0 %v416, 96
  %v426 = vpop.permute.xlu0 %425
  %v429 = vsel %vm102, %v423, 0
  %431 = vmatpush.bf16.msra.mxu0 0
  %432 = vmatpush.bf16.msra.mxu0 0
  %433 = vmatpush.bf16.msra.mxu0 0
  %434 = vmatpush.bf16.msra.mxu0 0
  %435 = vmatpush.bf16.msra.mxu0 0
  %436 = vmatpush.bf16.msra.mxu0 0
  %437 = vmatpush.bf16.msra.mxu0 %v181
  %438 = vmatpush.bf16.msra.mxu0 %v180
  %439 = vmatmul.bf16.gmra.mxu0 %v429
  %v440 = vpop.f32.mrf.mxu0
  %v441 = vadd.f32 %v426, %v440
  %v442 = vpop.f32.mrf.mxu0
  %443 = vdwg.mxu0
  %v444 = vtanh.pop %v441
  %446 = vrot.lane.b32.xlu0 %v444, 32
  %v447 = vpop.permute.xlu0 %446
  %v449 = vsel %vm102, %v422, %v447
  %v450 = vpack.c.bf16 %v449, %v449
  %v452 = vsel %vm151, %v450, 0
  %454 = vmatpush.bf16.msra.mxu0 0
  %455 = vmatpush.bf16.msra.mxu0 0
  %456 = vmatpush.bf16.msra.mxu0 0
  %457 = vmatpush.bf16.msra.mxu0 0
  %458 = vmatpush.bf16.msra.mxu0 %v146
  %459 = vmatpush.bf16.msra.mxu0 %v145
  %460 = vmatpush.bf16.msra.mxu0 %v144
  %461 = vmatpush.bf16.msra.mxu0 %v143
  %462 = vmatmul.bf16.gmra.mxu0 %v452
  %v463 = vpop.f32.mrf.mxu0
  %v464 = vadd.f32 %v125, %v463
  %v465 = vpop.f32.mrf.mxu0
  %466 = vdwg.mxu0
  %s467 = scalar_lea.vmem [#allocation2], 48
  %v468 = vld [vmem:[%s467] sm:$0xff]
  %v469 = vadd.f32 %v468, %v464
  %v470 = vtanh.pop %v469
  %v471 = vpack.c.bf16 %v470, %v470
  %473 = vrot.lane.b32.xlu0 %v464, 96
  %v474 = vpop.permute.xlu0 %473
  %v477 = vsel %vm102, %v471, 0
  %479 = vmatpush.bf16.msra.mxu0 0
  %480 = vmatpush.bf16.msra.mxu0 0
  %481 = vmatpush.bf16.msra.mxu0 0
  %482 = vmatpush.bf16.msra.mxu0 0
  %483 = vmatpush.bf16.msra.mxu0 0
  %484 = vmatpush.bf16.msra.mxu0 0
  %485 = vmatpush.bf16.msra.mxu0 %v181
  %486 = vmatpush.bf16.msra.mxu0 %v180
  %487 = vmatmul.bf16.gmra.mxu0 %v477
  %v488 = vpop.f32.mrf.mxu0
  %v489 = vadd.f32 %v474, %v488
  %v490 = vpop.f32.mrf.mxu0
  %491 = vdwg.mxu0
  %v492 = vtanh.pop %v489
  %494 = vrot.lane.b32.xlu0 %v492, 32
  %v495 = vpop.permute.xlu0 %494
  %v497 = vsel %vm102, %v470, %v495
  %v498 = vpack.c.bf16 %v497, %v497
  %v500 = vsel %vm151, %v498, 0
  %502 = vmatpush.bf16.msra.mxu0 0
  %503 = vmatpush.bf16.msra.mxu0 0
  %504 = vmatpush.bf16.msra.mxu0 0
  %505 = vmatpush.bf16.msra.mxu0 0
  %506 = vmatpush.bf16.msra.mxu0 %v146
  %507 = vmatpush.bf16.msra.mxu0 %v145
  %508 = vmatpush.bf16.msra.mxu0 %v144
  %509 = vmatpush.bf16.msra.mxu0 %v143
  %510 = vmatmul.bf16.gmra.mxu0 %v500
  %v511 = vpop.f32.mrf.mxu0
  %v512 = vadd.f32 %v125, %v511
  %v513 = vpop.f32.mrf.mxu0
  %514 = vdwg.mxu0
  %s515 = scalar_lea.vmem [#allocation2], 56
  %v516 = vld [vmem:[%s515] sm:$0xff]
  %v517 = vadd.f32 %v516, %v512
  %v518 = vtanh.pop %v517
  %v519 = vpack.c.bf16 %v518, %v518
  %521 = vrot.lane.b32.xlu0 %v512, 96
  %v522 = vpop.permute.xlu0 %521
  %v525 = vsel %vm102, %v519, 0
  %527 = vmatpush.bf16.msra.mxu0 0
  %528 = vmatpush.bf16.msra.mxu0 0
  %529 = vmatpush.bf16.msra.mxu0 0
  %530 = vmatpush.bf16.msra.mxu0 0
  %531 = vmatpush.bf16.msra.mxu0 0
  %532 = vmatpush.bf16.msra.mxu0 0
  %533 = vmatpush.bf16.msra.mxu0 %v181
  %534 = vmatpush.bf16.msra.mxu0 %v180
  %535 = vmatmul.bf16.gmra.mxu0 %v525
  %v536 = vpop.f32.mrf.mxu0
  %v537 = vadd.f32 %v522, %v536
  %v538 = vpop.f32.mrf.mxu0
  %539 = vdwg.mxu0
  %v540 = vtanh.pop %v537
  %542 = vrot.lane.b32.xlu0 %v540, 32
  %v543 = vpop.permute.xlu0 %542
  %v545 = vsel %vm102, %v518, %v543
  %v546 = vpack.c.bf16 %v545, %v545
  %v547 = vld [vmem:[%s6] sm:$0xf]
  %v548 = vld [vmem:[%s6 + $0x4] sm:$0xf]
  %v549 = vld [vmem:[%s6 + $0x8] sm:$0xf]
  %v550 = vld [vmem:[%s6 + $0xc] sm:$0xf]
  %v551 = vld [vmem:[%s7] sm:$0x1]
  %v553 = vperm.slane %v551, 0
  %556 = vrot.lane.b32.xlu0 %v546, 96
  %v557 = vpop.permute.xlu0 %556
  %v562 = vunpack.c.l.b16 %v547
  %v563 = vunpack.c.l.b16 %v548
  %v564 = vunpack.c.l.b16 %v549
  %v565 = vunpack.c.l.b16 %v550
  %v566 = vpack.c.b16 %v563, %v562
  %v567 = vpack.c.b16 %v565, %v564
  %v571 = vsel %vm102, %v557, 0
  %573 = vmatpush.bf16.msra.mxu0 0
  %574 = vmatpush.bf16.msra.mxu0 0
  %575 = vmatpush.bf16.msra.mxu0 0
  %576 = vmatpush.bf16.msra.mxu0 0
  %577 = vmatpush.bf16.msra.mxu0 0
  %578 = vmatpush.bf16.msra.mxu0 0
  %579 = vmatpush.bf16.msra.mxu0 %v567
  %580 = vmatpush.bf16.msra.mxu0 %v566
  %581 = vmatmul.bf16.gmra.mxu0 %v571
  %v582 = vpop.f32.mrf.mxu0
  %v583 = vadd.f32 %v553, %v582
  %v584 = vpop.f32.mrf.mxu0
  %585 = vdwg.mxu0
  %586 = vst [vmem:[%s8] sm:$0xff] %v583
  // Predicated region
  $region34: #{rnn_forward.1} parent=0 // pred_check
    _
  $region35: #{rnn_forward.1} parent=0 // pred_check_branch
    %588 = sbr.rel (0) target = $region37
  $region36: #{rnn_forward.1} parent=0 // pred_region
    _
  $region37: #{rnn_forward.1} parent=0 // pred_fallthru
    _
  // Predicated region
  $region38: #{rnn_forward.1} parent=0 // pred_check
    _
  $region39: #{rnn_forward.1} parent=0 // pred_check_branch
    %590 = sbr.rel (0) target = $region41
  $region40: #{rnn_forward.1} parent=0 // pred_region
    _
  $region41: #{rnn_forward.1} parent=0 // pred_fallthru
    _

</llo_original>
